<compile_context>
chip_gen: v6e
topology: v6e:2x2x1
jax: 0.10.0
libtpu: 0.0.40
codegen_flags: <defaults>
</compile_context>

<pallas_src>
import functools
import math

import jax
import jax.numpy as jnp
from jax import lax
from jax.experimental import pallas as pl
from jax.experimental.pallas import tpu as pltpu

# 48 MiB: above the 32 MiB scoped default (v5e/v6e), safely below v7x's 64 MiB.
_VMEM_LIMIT = 48 * 1024 * 1024


def _pick_tile(n, candidates):
    """Largest candidate tile that evenly divides n, else the full extent."""
    for c in candidates:
        if n % c == 0:
            return c
    return n


# ----------------------------------------------------------------------------
# Linear projection:  y = x @ W_t + b   (W_t is pre-transposed: (Din, Dout))
# Grid (M tiles, Dout tiles, K tiles); K is the streamed reduction axis with a
# f32 VMEM accumulator, so large (fused QKV) weights are never fully resident.
# ----------------------------------------------------------------------------
def _linear_kernel(x_ref, w_ref, b_ref, o_ref, acc_ref):
    k = pl.program_id(2)

    @pl.when(k == 0)
    def _():
        acc_ref[...] = jnp.zeros_like(acc_ref)

    x = x_ref[...]
    w = w_ref[...]
    if x.dtype != w.dtype:          # bf16 activations x f32 weights: cast up
        x = x.astype(w.dtype)
    acc_ref[...] += jnp.dot(x, w, preferred_element_type=jnp.float32)

    @pl.when(k == pl.num_programs(2) - 1)
    def _():
        o_ref[...] = (acc_ref[...] + b_ref[...].astype(jnp.float32)).astype(o_ref.dtype)


def linear(x, w_t, b, out_dtype=jnp.float32):
    """x: (M, Din), w_t: (Din, Dout) pre-transposed, b: (Dout,) -> (M, Dout)."""
    M, Din = x.shape
    Dout = w_t.shape[1]
    tm = _pick_tile(M, (512, 256, 128))     # mem-bound: prefer big row tiles
    tn = _pick_tile(Dout, (512, 256, 128))
    tk = _pick_tile(Din, (512, 256, 128))
    b2d = b.reshape(1, Dout)
    return pl.pallas_call(
        _linear_kernel,
        out_shape=jax.ShapeDtypeStruct((M, Dout), out_dtype),
        grid=(M // tm, Dout // tn, Din // tk),
        in_specs=[
            pl.BlockSpec((tm, tk), lambda i, n, k: (i, k)),
            pl.BlockSpec((tk, tn), lambda i, n, k: (k, n)),
            pl.BlockSpec((1, tn), lambda i, n, k: (0, n)),
        ],
        out_specs=pl.BlockSpec((tm, tn), lambda i, n, k: (i, n)),
        scratch_shapes=[pltpu.VMEM((tm, tn), jnp.float32)],
        compiler_params=pltpu.CompilerParams(
            dimension_semantics=("parallel", "parallel", "arbitrary"),
            vmem_limit_bytes=_VMEM_LIMIT,
        ),
    )(x, w_t, b2d)


# ----------------------------------------------------------------------------
# Flash-style multi-head attention kernel (online softmax).
# Two grid layouts share this body:
#   * heads-in-block: grid (B, Sq//tq, Sk//tk), h heads per step (q_axis=1).
#   * head-as-grid-axis (d_k % 128 == 0): grid (B, h, Sq//tq, Sk//tk), h=1.
# The 1/sqrt(d_k) scale is pre-folded into the q projection weights.
# ----------------------------------------------------------------------------
def _mha_attention_kernel(*refs, h, d_k, apply_mask, causal, q_axis, k_axis, tq, tk):
    use_mask_operand = apply_mask and not causal
    if use_mask_operand:
        q_ref, k_ref, v_ref, mask_ref, o_ref, m_sc, l_sc, acc_sc = refs
    else:
        q_ref, k_ref, v_ref, o_ref, m_sc, l_sc, acc_sc = refs

    qi = pl.program_id(q_axis)
    ki = pl.program_id(k_axis)

    @pl.when(ki == 0)
    def _():
        m_sc[...] = jnp.full_like(m_sc, -jnp.inf)
        l_sc[...] = jnp.zeros_like(l_sc)
        acc_sc[...] = jnp.zeros_like(acc_sc)

    def update():
        q = q_ref[0]                         # (tq, h*d_k), scale pre-folded
        k = k_ref[0]                         # (tk, h*d_k)
        v = v_ref[0]                         # (tk, h*d_k)
        if apply_mask:
            if causal:
                # In-kernel causal mask from absolute indices: no mask DMA.
                row = qi * tq + lax.broadcasted_iota(jnp.int32, (tq, tk), 0)
                col = ki * tk + lax.broadcasted_iota(jnp.int32, (tq, tk), 1)
                masked = col > row
            else:
                # int8 mask; convert to f32 before comparing so the select
                # mask shares the f32 score layout.
                masked = mask_ref[0].astype(jnp.float32) == 0.0

        contract_last = (((1,), (1,)), ((), ()))   # q_h @ k_h^T w/o transpose
        for hh in range(h):
            cols = slice(hh * d_k, (hh + 1) * d_k)
            s = lax.dot_general(q[:, cols], k[:, cols], contract_last,
                                preferred_element_type=jnp.float32)   # (tq, tk)
            if apply_mask:
                s = jnp.where(masked, jnp.float32(-1e9), s)

            m_prev = m_sc[:, hh:hh + 1]
            m_new = jnp.maximum(m_prev, jnp.max(s, axis=-1, keepdims=True))
            alpha = jnp.exp(m_prev - m_new)
            p = jnp.exp(s - m_new)
            l_new = alpha * l_sc[:, hh:hh + 1] + jnp.sum(p, axis=-1, keepdims=True)
            acc_new = alpha * acc_sc[hh] + jnp.dot(
                p.astype(v.dtype), v[:, cols], preferred_element_type=jnp.float32)

            # In-place per-head slice stores: no concatenate, short live ranges.
            m_sc[:, hh:hh + 1] = m_new
            l_sc[:, hh:hh + 1] = l_new
            acc_sc[hh] = acc_new

    if causal:
        # Skip k tiles that lie entirely after the last query row of this tile.
        @pl.when(ki * tk < (qi + 1) * tq)
        def _():
            update()
    else:
        update()

    @pl.when(ki == pl.num_programs(k_axis) - 1)
    def _():
        inv_l = pl.reciprocal(l_sc[...], approx=True)   # EUP slot
        for hh in range(h):
            cols = slice(hh * d_k, (hh + 1) * d_k)
            o_ref[0, :, cols] = (acc_sc[hh] * inv_l[:, hh:hh + 1]).astype(o_ref.dtype)


def attention_pallas(q_arr, k_arr, v_arr, mask, *, h, d_k, apply_mask,
                     causal=False, q_col=0, k_col=0, v_col=0, tq=None, tk=None,
                     out_dtype=None):
    """q/k/v arrays: (B, S, n*h*d_k) -- `*_col` selects the d_model-wide column
    block (a fused (B, S, 3*d_model) QKV array is consumed directly).
    Returns (B, Sq, h*d_k)."""
    B, Sq = q_arr.shape[0], q_arr.shape[1]
    Sk = k_arr.shape[1]
    d_model = h * d_k
    out_dtype = q_arr.dtype if out_dtype is None else out_dtype
    tq = _pick_tile(Sq, (256, 128)) if tq is None else tq
    tk = _pick_tile(Sk, (256, 128)) if tk is None else tk   # >=256 fills v6e/v7x MXU depth
    assert Sq % tq == 0 and Sk % tk == 0
    causal = bool(causal) and apply_mask
    use_mask_operand = apply_mask and not causal

    head_grid = (d_k % 128 == 0)
    if head_grid:
        # Head as a grid axis: lane-aligned per-head MXU shapes, one head live,
        # extra "parallel" axis for megacore / v7x 2-TC sharding.
        grid = (B, h, Sq // tq, Sk // tk)
        q_axis, k_axis = 2, 3
        kh, kd = 1, d_k
        in_specs = [
            pl.BlockSpec((1, tq, d_k), lambda b, hh, qi, ki, c=q_col, nh=h: (b, qi, c * nh + hh)),
            pl.BlockSpec((1, tk, d_k), lambda b, hh, qi, ki, c=k_col, nh=h: (b, ki, c * nh + hh)),
            pl.BlockSpec((1, tk, d_k), lambda b, hh, qi, ki, c=v_col, nh=h: (b, ki, c * nh + hh)),
        ]
        mask_spec = pl.BlockSpec((1, tq, tk), lambda b, hh, qi, ki: (b, qi, ki))
        out_spec = pl.BlockSpec((1, tq, d_k), lambda b, hh, qi, ki: (b, qi, hh))
        scratch = [pltpu.VMEM((tq, 1), jnp.float32),        # running max m
                   pltpu.VMEM((tq, 1), jnp.float32),        # running sum l
                   pltpu.VMEM((1, tq, d_k), jnp.float32)]   # output accumulator
        dims = ("parallel", "parallel", "parallel", "arbitrary")
    else:
        grid = (B, Sq // tq, Sk // tk)
        q_axis, k_axis = 1, 2
        kh, kd = h, d_k
        in_specs = [
            pl.BlockSpec((1, tq, d_model), lambda b, qi, ki, c=q_col: (b, qi, c)),
            pl.BlockSpec((1, tk, d_model), lambda b, qi, ki, c=k_col: (b, ki, c)),
            pl.BlockSpec((1, tk, d_model), lambda b, qi, ki, c=v_col: (b, ki, c)),
        ]
        mask_spec = pl.BlockSpec((1, tq, tk), lambda b, qi, ki: (b, qi, ki))
        out_spec = pl.BlockSpec((1, tq, d_model), lambda b, qi, ki: (b, qi, 0))
        scratch = [pltpu.VMEM((tq, h), jnp.float32),
                   pltpu.VMEM((tq, h), jnp.float32),
                   pltpu.VMEM((h, tq, d_k), jnp.float32)]
        dims = ("parallel", "parallel", "arbitrary")

    operands = [q_arr, k_arr, v_arr]
    if use_mask_operand:
        assert mask is not None and mask.shape == (B, Sq, Sk)
        operands.append((jnp.asarray(mask) != 0).astype(jnp.int8))   # 4x less DMA than f32
        in_specs.append(mask_spec)

    kernel = functools.partial(_mha_attention_kernel, h=kh, d_k=kd,
                               apply_mask=apply_mask, causal=causal,
                               q_axis=q_axis, k_axis=k_axis, tq=tq, tk=tk)

    return pl.pallas_call(
        kernel,
        out_shape=jax.ShapeDtypeStruct((B, Sq, d_model), out_dtype),
        grid=grid,
        in_specs=in_specs,
        out_specs=out_spec,
        scratch_shapes=scratch,
        compiler_params=pltpu.CompilerParams(
            dimension_semantics=dims,
            vmem_limit_bytes=_VMEM_LIMIT,
        ),
    )(*operands)


# ----------------------------------------------------------------------------
# Parameter prep + full MultiHeadedAttention forward
# ----------------------------------------------------------------------------
def prepare_params(h, wq, bq, wk, bk, wv, bv, wo, bo):
    """One-time prep: transpose PyTorch (Dout, Din) weights to (Din, Dout),
    fold 1/sqrt(d_k) into the q projection, build the fused QKV weight."""
    d_model = wq.shape[0]
    d_k = d_model // h
    scale = 1.0 / math.sqrt(d_k)
    wq_t, wk_t, wv_t, wo_t = wq.T, wk.T, wv.T, wo.T
    wq_t_s, bq_s = wq_t * scale, bq * scale
    return dict(
        h=h,
        # Unscaled copies (reference / parity with the PyTorch module):
        wq_t=wq_t, bq=bq, wk_t=wk_t, bk=bk, wv_t=wv_t, bv=bv, wo_t=wo_t, bo=bo,
        # Kernel copies (softmax scale pre-folded into q):
        wq_t_s=wq_t_s, bq_s=bq_s,
        wqkv_t_s=jnp.concatenate([wq_t_s, wk_t, wv_t], axis=1),
        bqkv_s=jnp.concatenate([bq_s, bk, bv], axis=0),
    )


def multi_headed_attention(params, query, key, value, mask, is_src,
                           tq=None, tk=None, causal=False,
                           compute_dtype=jnp.float32):
    """query/key/value: (B, S, d_dec); mask: (B, S_q, S_k) (1 = keep, 0 = mask)
    or None when unused; is_src mirrors the module's is_src[0].
    causal=True promises the mask is lower-triangular: the mask tensor is then
    ignored and generated in-kernel (with masked-tile skipping).
    compute_dtype=bf16 casts the inter-kernel intermediates + matmul operands
    (f32 accumulation and softmax stats are kept)."""
    if isinstance(is_src, (list, tuple)):
        is_src = is_src[0]
    apply_mask = not bool(is_src)

    B, Sq, d_model = query.shape
    Sk = key.shape[1]
    h = params["h"]
    d_k = d_model // h

    self_attn = (query is key) and (key is value)
    if self_attn:
        # Fused QKV projection: activations read from HBM once, one launch.
        qkv = linear(query.reshape(B * Sq, d_model),
                     params["wqkv_t_s"], params["bqkv_s"],
                     out_dtype=compute_dtype)              # (B*Sq, 3*d_model)
        if d_model % 128 == 0:
            # Lane-aligned: consume the fused array directly via column blocks.
            qkv = qkv.reshape(B, Sq, 3 * d_model)
            x = attention_pallas(qkv, qkv, qkv, mask, h=h, d_k=d_k,
                                 apply_mask=apply_mask, causal=causal,
                                 q_col=0, k_col=1, v_col=2, tq=tq, tk=tk)
        else:
            q = qkv[:, :d_model].reshape(B, Sq, d_model)
            k = qkv[:, d_model:2 * d_model].reshape(B, Sk, d_model)
            v = qkv[:, 2 * d_model:].reshape(B, Sk, d_model)
            x = attention_pallas(q, k, v, mask, h=h, d_k=d_k,
                                 apply_mask=apply_mask, causal=causal,
                                 tq=tq, tk=tk)
    else:
        q = linear(query.reshape(B * Sq, d_model), params["wq_t_s"],
                   params["bq_s"], out_dtype=compute_dtype).reshape(B, Sq, d_model)
        k = linear(key.reshape(B * Sk, d_model), params["wk_t"],
                   params["bk"], out_dtype=compute_dtype).reshape(B, Sk, d_model)
        v = linear(value.reshape(B * Sk, d_model), params["wv_t"],
                   params["bv"], out_dtype=compute_dtype).reshape(B, Sk, d_model)
        x = attention_pallas(q, k, v, mask, h=h, d_k=d_k,
                             apply_mask=apply_mask, causal=causal, tq=tq, tk=tk)

    # x is already (B, Sq, h*d_k): no head transpose / reshuffle needed.
    out = linear(x.reshape(B * Sq, d_model), params["wo_t"], params["bo"],
                 out_dtype=jnp.float32)
    return out.reshape(B, Sq, d_model)

    # TODO(synk): dropout is constructed in the PyTorch __init__ but never
    # applied in forward()/attention(), so it is intentionally omitted here.


# ----------------------------------------------------------------------------
# Reference (pure JAX) for correctness checks
# ----------------------------------------------------------------------------
def reference_mha(params, query, key, value, mask, is_src):
    if isinstance(is_src, (list, tuple)):
        is_src = is_src[0]
    B, Sq, d_model = query.shape
    Sk = key.shape[1]
    h = params["h"]
    d_k = d_model // h

    def lin(x, w_t, b):
        return x @ w_t + b

    q = lin(query, params["wq_t"], params["bq"]).reshape(B, Sq, h, d_k).transpose(0, 2, 1, 3)
    k = lin(key, params["wk_t"], params["bk"]).reshape(B, Sk, h, d_k).transpose(0, 2, 1, 3)
    v = lin(value, params["wv_t"], params["bv"]).reshape(B, Sk, h, d_k).transpose(0, 2, 1, 3)

    scores = jnp.einsum("bhqd,bhkd->bhqk", q, k) / math.sqrt(d_k)
    if not bool(is_src):
        scores = jnp.where(mask[:, None, :, :] == 0, -1e9, scores)
    p = jax.nn.softmax(scores, axis=-1)
    x = jnp.einsum("bhqk,bhkd->bhqd", p, v)
    x = x.transpose(0, 2, 1, 3).reshape(B, Sq, d_model)
    return lin(x, params["wo_t"], params["bo"])


def _init_params(key, h, d_model):
    ks = jax.random.split(key, 8)
    bound = 1.0 / math.sqrt(d_model)

    def one(kw, kb):
        w = jax.random.uniform(kw, (d_model, d_model), jnp.float32, -bound, bound)
        b = jax.random.uniform(kb, (d_model,), jnp.float32, -bound, bound)
        return w, b

    wq, bq = one(ks[0], ks[1])
    wk, bk = one(ks[2], ks[3])
    wv, bv = one(ks[4], ks[5])
    wo, bo = one(ks[6], ks[7])
    return prepare_params(h, wq, bq, wk, bk, wv, bv, wo, bo)


def _causal_mask(B, S):
    return jnp.tril(jnp.ones((S, S), jnp.float32))[None].repeat(B, axis=0)


if __name__ == "__main__":
    root = jax.random.PRNGKey(0)
    kp1, kp2, kp3, kp4, kp5, kx1, kq2, kk2, kv2, kx3, kx4, kx5, kx6 = jax.random.split(root, 13)
    TOL = dict(atol=5e-3, rtol=5e-3)       # approx reciprocal in softmax denom
    TOL_BF16 = dict(atol=5e-2, rtol=5e-2)  # bf16 intermediates / matmul operands

    # --- Test 1: self-attn, mask applied (int8 mask path), fused lane-aligned QKV ---
    B, S, d_dec, h = 2, 8, 128, 4
    p1 = _init_params(kp1, h, d_dec)
    x1 = jax.random.normal(kx1, (B, S, d_dec), jnp.float32)
    m1 = _causal_mask(B, S)
    out1 = jax.block_until_ready(multi_headed_attention(p1, x1, x1, x1, m1, is_src=False))
    ref1 = reference_mha(p1, x1, x1, x1, m1, is_src=False)
    assert out1.shape == (B, S, d_dec)
    assert jnp.allclose(out1, ref1, **TOL), "test1 mismatch vs reference"

    # --- Test 2: cross-attention, is_src=True (no mask), unfused projections ---
    B, Sq, Sk, d_dec, h = 2, 8, 16, 32, 4
    p2 = _init_params(kp2, h, d_dec)
    q2 = jax.random.normal(kq2, (B, Sq, d_dec), jnp.float32)
    k2 = jax.random.normal(kk2, (B, Sk, d_dec), jnp.float32)
    v2 = jax.random.normal(kv2, (B, Sk, d_dec), jnp.float32)
    out2 = jax.block_until_ready(multi_headed_attention(p2, q2, k2, v2, None, is_src=True))
    ref2 = reference_mha(p2, q2, k2, v2, None, is_src=True)
    assert out2.shape == (B, Sq, d_dec)
    assert jnp.allclose(out2, ref2, **TOL), "test2 mismatch vs reference"

    # --- Test 3: self-attn, general mask path with streamed Sk tiles (online softmax) ---
    B, S, d_dec, h = 2, 256, 32, 4
    p3 = _init_params(kp3, h, d_dec)
    x3 = jax.random.normal(kx3, (B, S, d_dec), jnp.float32)
    m3 = _causal_mask(B, S)
    out3 = jax.block_until_ready(
        multi_headed_attention(p3, x3, x3, x3, m3, is_src=False, tq=128, tk=128))
    ref3 = reference_mha(p3, x3, x3, x3, m3, is_src=False)
    assert out3.shape == (B, S, d_dec)
    assert jnp.allclose(out3, ref3, **TOL), "test3 mismatch vs reference"

    # --- Test 4: causal fast path (no mask DMA, in-kernel iota, tile skipping) ---
    B, S, d_dec, h = 2, 256, 64, 4
    p4 = _init_params(kp4, h, d_dec)
    x4 = jax.random.normal(kx4, (B, S, d_dec), jnp.float32)
    m4 = _causal_mask(B, S)   # only the reference needs the explicit mask
    out4 = jax.block_until_ready(
        multi_headed_attention(p4, x4, x4, x4, None, is_src=False,
                               tq=64, tk=64, causal=True))
    ref4 = reference_mha(p4, x4, x4, x4, m4, is_src=False)
    assert out4.shape == (B, S, d_dec)
    assert jnp.allclose(out4, ref4, **TOL), "test4 mismatch vs reference"

    # --- Test 5: head-as-grid-axis path (d_k = 128), masked ---
    B, S, d_dec, h = 2, 128, 256, 2
    p5 = _init_params(kp5, h, d_dec)
    x5 = jax.random.normal(kx5, (B, S, d_dec), jnp.float32)
    m5 = _causal_mask(B, S)
    out5 = jax.block_until_ready(multi_headed_attention(p5, x5, x5, x5, m5, is_src=False))
    ref5 = reference_mha(p5, x5, x5, x5, m5, is_src=False)
    assert out5.shape == (B, S, d_dec)
    assert jnp.allclose(out5, ref5, **TOL), "test5 mismatch vs reference"

    # --- Test 6: bf16 compute path (bf16 intermediates + matmul operands) ---
    B, S, d_dec, h = 2, 256, 128, 4
    p6 = _init_params(kp1, h, d_dec)
    x6 = jax.random.normal(kx6, (B, S, d_dec), jnp.float32)
    m6 = _causal_mask(B, S)
    out6 = jax.block_until_ready(
        multi_headed_attention(p6, x6, x6, x6, m6, is_src=False,
                               tq=128, tk=128, compute_dtype=jnp.bfloat16))
    ref6 = reference_mha(p6, x6, x6, x6, m6, is_src=False)
    assert out6.shape == (B, S, d_dec)
    assert jnp.allclose(out6, ref6, **TOL_BF16), "test6 mismatch vs reference"

    print("KERNEL_OK")
</pallas_src>

<mosaic_0001>
module attributes {stable_mosaic.version = 11 : i64} {
  func.func @_linear_kernel(%arg0: i32, %arg1: i32, %arg2: i32, %arg3: memref<16x128xf32, #tpu.memory_space<vmem>>, %arg4: memref<128x128xf32, #tpu.memory_space<vmem>>, %arg5: memref<1x128xf32, #tpu.memory_space<vmem>>, %arg6: memref<16x128xf32, #tpu.memory_space<vmem>>, %arg7: memref<16x128xf32, #tpu.memory_space<vmem>>) attributes {dimension_semantics = [#tpu.dimension_semantics<parallel>, #tpu.dimension_semantics<parallel>, #tpu.dimension_semantics<arbitrary>], iteration_bounds = array<i64: 1, 3, 1>, scalar_prefetch = 0 : i64, scratch_operands = 1 : i64, tpu.core_type = #tpu.core_type<tc>, window_params = [{transform_indices = @transform_0, window_bounds = array<i64: 16, 128>}, {transform_indices = @transform_1, window_bounds = array<i64: 128, 128>}, {transform_indices = @transform_2, window_bounds = array<i64: 1, 128>}, {transform_indices = @transform_3, window_bounds = array<i64: 16, 128>}]} {
    %c0_i32 = arith.constant 0 : i32
    %0 = arith.cmpi eq, %arg2, %c0_i32 : i32
    %1 = arith.extui %0 : i1 to i32
    %c0_i32_0 = arith.constant 0 : i32
    %2 = arith.cmpi ne, %1, %c0_i32_0 : i32
    scf.if %2 {
      %cst_10 = arith.constant 0.000000e+00 : f32
      %12 = vector.broadcast %cst_10 : f32 to vector<16x128xf32>
      %c0_11 = arith.constant 0 : index
      %c0_12 = arith.constant 0 : index
      %13 = vector.load %arg7[%c0_11, %c0_12] : memref<16x128xf32, #tpu.memory_space<vmem>>, vector<16x128xf32>
      tpu.vector_store %arg7[%c0_11, %c0_12], %12 {strides = array<i32>} : memref<16x128xf32, #tpu.memory_space<vmem>>, vector<16x128xf32>,
    } else {
    }
    %c0 = arith.constant 0 : index
    %c0_1 = arith.constant 0 : index
    %3 = vector.load %arg3[%c0, %c0_1] : memref<16x128xf32, #tpu.memory_space<vmem>>, vector<16x128xf32>
    %c0_2 = arith.constant 0 : index
    %c0_3 = arith.constant 0 : index
    %4 = vector.load %arg4[%c0_2, %c0_3] : memref<128x128xf32, #tpu.memory_space<vmem>>, vector<128x128xf32>
    %c0_4 = arith.constant 0 : index
    %c0_5 = arith.constant 0 : index
    %5 = vector.load %arg7[%c0_4, %c0_5] : memref<16x128xf32, #tpu.memory_space<vmem>>, vector<16x128xf32>
    %cst = arith.constant dense<0.000000e+00> : vector<16x128xf32>
    %6 = tpu.matmul %3, %4, %cst {dimension_numbers = #tpu.dot_dimension_numbers<[1], [0], [0], [1], [0, 0, 1, 1], [], []>} : vector<16x128xf32>, vector<128x128xf32>, vector<16x128xf32> -> vector<16x128xf32>
    %7 = arith.addf %5, %6 : vector<16x128xf32>
    %c0_6 = arith.constant 0 : index
    %c0_7 = arith.constant 0 : index
    %8 = vector.load %arg7[%c0_6, %c0_7] : memref<16x128xf32, #tpu.memory_space<vmem>>, vector<16x128xf32>
    tpu.vector_store %arg7[%c0_6, %c0_7], %7 {strides = array<i32>} : memref<16x128xf32, #tpu.memory_space<vmem>>, vector<16x128xf32>,
    %c0_i32_8 = arith.constant 0 : i32
    %9 = arith.cmpi eq, %arg2, %c0_i32_8 : i32
    %10 = arith.extui %9 : i1 to i32
    %c0_i32_9 = arith.constant 0 : i32
    %11 = arith.cmpi ne, %10, %c0_i32_9 : i32
    scf.if %11 {
      %c0_10 = arith.constant 0 : index
      %c0_11 = arith.constant 0 : index
      %12 = vector.load %arg7[%c0_10, %c0_11] : memref<16x128xf32, #tpu.memory_space<vmem>>, vector<16x128xf32>
      %c0_12 = arith.constant 0 : index
      %c0_13 = arith.constant 0 : index
      %13 = vector.load %arg5[%c0_12, %c0_13] : memref<1x128xf32, #tpu.memory_space<vmem>>, vector<1x128xf32>
      %14 = vector.broadcast %13 : vector<1x128xf32> to vector<16x128xf32>
      %15 = arith.addf %12, %14 : vector<16x128xf32>
      %c0_14 = arith.constant 0 : index
      %c0_15 = arith.constant 0 : index
      %16 = vector.load %arg6[%c0_14, %c0_15] : memref<16x128xf32, #tpu.memory_space<vmem>>, vector<16x128xf32>
      tpu.vector_store %arg6[%c0_14, %c0_15], %15 {strides = array<i32>} : memref<16x128xf32, #tpu.memory_space<vmem>>, vector<16x128xf32>,
    } else {
    }
    return
  }
  func.func @transform_0(%arg0: i32, %arg1: i32, %arg2: i32) -> (i32, i32) {
    %c0_i32 = arith.constant 0 : i32
    return %arg0, %arg2 : i32, i32
  }
  func.func @transform_1(%arg0: i32, %arg1: i32, %arg2: i32) -> (i32, i32) {
    %c0_i32 = arith.constant 0 : i32
    return %arg2, %arg1 : i32, i32
  }
  func.func @transform_2(%arg0: i32, %arg1: i32, %arg2: i32) -> (i32, i32) {
    %c0_i32 = arith.constant 0 : i32
    %c0_i32_0 = arith.constant 0 : i32
    return %c0_i32, %arg1 : i32, i32
  }
  func.func @transform_3(%arg0: i32, %arg1: i32, %arg2: i32) -> (i32, i32) {
    %c0_i32 = arith.constant 0 : i32
    return %arg0, %arg1 : i32, i32
  }
}

</mosaic_0001>

<llo_original>
// kernel: tpu_custom_call.1
$region0: #{tpu_custom_call.1}
  #allocation0 [shape = 'u32[]', space=smem, size = 0x4, offset = 0x4, fixed_abs, tag = 'smem constant byte address 0x4 - core index']
  #allocation1 [shape = 'u32[144,128]{1,0:T(1,128)}', space=vmem, size = 0x12000, scoped, tag = 'internal scratch']
  #allocation2 [shape = 'f32[16,128]{1,0:T(8,128)}', space=vmem, size = 0x2000, scoped, tag = 'scratch operand']
  %s0 = inlined_call_operand.hbm [shape: f32[16,128], index: 0, kind: input, shape index: {}]
  %s1 = inlined_call_operand.hbm [shape: f32[128,384], index: 1, kind: input, shape index: {}]
  %s2 = inlined_call_operand.vmem [shape: f32[1,384], index: 2, kind: input, shape index: {}]
  %s3 = inlined_call_operand.hbm [shape: f32[16,384], index: 3, kind: output, shape index: {}]
  %s4 = sld [smem:[#allocation0]]
  $region61: #{tpu_custom_call.1} parent=0
    _
  %s6 = ssub.s32 1, %s4
  %s7 = scalar_select 0, %s6, %s4
  $region1: #{tpu_custom_call.1} parent=0
    #allocation3 [shape = 'u8[8192]{0}', space=vmem, size = 0x2000, scoped, tag = 'input window, operand 0, single buffered']
    #allocation4 [shape = 's32[2]{0}', space=sflag, size = 0x8, scoped, tag = 'scoped memory for tpu_custom_call.1']
    #allocation5 [shape = 's32[2]{0}', space=sflag, size = 0x8, scoped, tag = 'scoped memory for tpu_custom_call.1']
    #allocation6 [shape = 'u8[131072]{0}', space=vmem, size = 0x20000, scoped, tag = 'input window, operand 1']
    #allocation7 [shape = 's32[2]{0}', space=sflag, size = 0x8, scoped, tag = 'scoped memory for tpu_custom_call.1']
    #allocation8 [shape = 'u8[16384]{0}', space=vmem, size = 0x4000, scoped, tag = 'output window, operand 0']
    %8 = vsyncpa [#allocation4], 0
    %9 = vsyncpa [#allocation7], 0
    %s10 = scalar_lea.sflag [#allocation7], 1
    %11 = vsyncpa %s10, 0
    %12 = vsyncpa [#allocation5], 0
    %s13 = scalar_lea.sflag [#allocation5], 1
    %14 = vsyncpa %s13, 0
    loop: start=0, step=1, limit=5
    $region2: #{tpu_custom_call.1} parent=1 // loop_pre_header
      _
    $region3: #{tpu_custom_call.1} parent=1 // loop_header
      %s16 = sphi 0, %s20
      %p17 = scmp.ge.s32.totalorder %s16, 5
      %s23 = sphi 0, %s42
      %s24 = sphi 0, %s38
      %s25 = sphi 0, %s34
      %s26 = sphi 0, %s23
      %s27 = sphi 0, %s24
      %s28 = sphi 0, %s25
      %s29 = sphi 0, %s26
      %s30 = sphi 0, %s27
      %s31 = sphi 0, %s28
      %s47 = sphi 0, %s49
      %s50 = sphi 0, %s47
      %s51 = sphi 0, %s50
      %s67 = sphi 0, %s51
      %s75 = sphi 0, %s77
      %s78 = sphi 0, %s75
      %s79 = sphi 0, %s78
      %s95 = sphi 0, %s79
      %s101 = sphi 0, %s103
      %s104 = sphi 0, %s101
      %s105 = sphi 0, %s104
      %s121 = sphi 0, %s105
      %s129 = sphi 0, %s131
      %s132 = sphi 0, %s129
      %s133 = sphi 0, %s132
      %s149 = sphi 0, %s133
    $region4: #{tpu_custom_call.1} parent=1 // loop_header_branch
      %19 = sbr.rel (%p17) target = $region8
    $region5: #{tpu_custom_call.1} parent=1 // loop_body
      %s21 = ssub.s32 %s16, 1
      %s22 = ssub.s32 %s16, 2
      %s32 = sadd.s32 1, %s25
      %p33 = scmp.ge.s32.totalorder %s32, 1
      %s34 = scalar_select %p33, 0, %s32
      %s35 = sadd.s32 1, %s24
      %s36 = scalar_select %p33, %s35, %s24
      %p37 = scmp.ge.s32.totalorder %s36, 3
      %s38 = scalar_select %p37, 0, %s36
      %s39 = sadd.s32 1, %s23
      %s40 = scalar_select %p37, %s39, %s23
      %p41 = scmp.ge.s32.totalorder %s40, 1
      %s42 = scalar_select %p41, 0, %s40
      %s43 = ssub.s32 %s23, %s42
      %s44 = ssub.s32 %s25, %s34
      %s45 = sor.u32 %s43, %s44
      %p46 = scmp.eq.s32.totalorder %s45, 0
      %s48 = sadd.s32 %s47, 1
      %s49 = scalar_select %p46, %s47, %s48
      %p52 = pneg %p46
      %p53 = scmp.eq.s32.totalorder %s16, 2
      %p54 = por %p52, %p53
      %p55 = scmp.ne.s32.totalorder %s47, %s50
      %p56 = scmp.eq.s32.totalorder %s16, 0
      %p57 = por %p55, %p56
      %p58 = scmp.ne.s32.totalorder %s47, %s50
      %p59 = scmp.eq.s32.totalorder %s21, 2
      %p60 = por %p58, %p59
      %p61 = scmp.ne.s32.totalorder %s50, %s51
      %p62 = scmp.eq.s32.totalorder %s21, 0
      %p63 = por %p61, %p62
      %p64 = scmp.ne.s32.totalorder %s50, %s51
      %p65 = scmp.eq.s32.totalorder %s22, 2
      %p66 = por %p64, %p65
      %p68 = scmp.ne.s32.totalorder %s51, %s67
      %p69 = scmp.eq.s32.totalorder %s22, 0
      %p70 = por %p68, %p69
      %s71 = ssub.s32 %s25, %s34
      %s72 = ssub.s32 %s24, %s38
      %s73 = sor.u32 %s71, %s72
      %p74 = scmp.eq.s32.totalorder %s73, 0
      %s76 = sadd.s32 %s75, 1
      %s77 = scalar_select %p74, %s75, %s76
      %p80 = pneg %p74
      %p81 = scmp.eq.s32.totalorder %s16, 2
      %p82 = por %p80, %p81
      %p83 = scmp.ne.s32.totalorder %s75, %s78
      %p84 = scmp.eq.s32.totalorder %s16, 0
      %p85 = por %p83, %p84
      %p86 = scmp.ne.s32.totalorder %s75, %s78
      %p87 = scmp.eq.s32.totalorder %s21, 2
      %p88 = por %p86, %p87
      %p89 = scmp.ne.s32.totalorder %s78, %s79
      %p90 = scmp.eq.s32.totalorder %s21, 0
      %p91 = por %p89, %p90
      %p92 = scmp.ne.s32.totalorder %s78, %s79
      %p93 = scmp.eq.s32.totalorder %s22, 2
      %p94 = por %p92, %p93
      %p96 = scmp.ne.s32.totalorder %s79, %s95
      %p97 = scmp.eq.s32.totalorder %s22, 0
      %p98 = por %p96, %p97
      %s99 = ssub.s32 %s24, %s38
      %p100 = scmp.eq.s32.totalorder %s99, 0
      %s102 = sadd.s32 %s101, 1
      %s103 = scalar_select %p100, %s101, %s102
      %p106 = pneg %p100
      %p107 = scmp.eq.s32.totalorder %s16, 2
      %p108 = por %p106, %p107
      %p109 = scmp.ne.s32.totalorder %s101, %s104
      %p110 = scmp.eq.s32.totalorder %s16, 0
      %p111 = por %p109, %p110
      %p112 = scmp.ne.s32.totalorder %s101, %s104
      %p113 = scmp.eq.s32.totalorder %s21, 2
      %p114 = por %p112, %p113
      %p115 = scmp.ne.s32.totalorder %s104, %s105
      %p116 = scmp.eq.s32.totalorder %s21, 0
      %p117 = por %p115, %p116
      %p118 = scmp.ne.s32.totalorder %s104, %s105
      %p119 = scmp.eq.s32.totalorder %s22, 2
      %p120 = por %p118, %p119
      %p122 = scmp.ne.s32.totalorder %s105, %s121
      %p123 = scmp.eq.s32.totalorder %s22, 0
      %p124 = por %p122, %p123
      %s125 = ssub.s32 %s23, %s42
      %s126 = ssub.s32 %s24, %s38
      %s127 = sor.u32 %s125, %s126
      %p128 = scmp.eq.s32.totalorder %s127, 0
      %s130 = sadd.s32 %s129, 1
      %s131 = scalar_select %p128, %s129, %s130
      %p134 = pneg %p128
      %p135 = scmp.eq.s32.totalorder %s16, 2
      %p136 = por %p134, %p135
      %p137 = scmp.ne.s32.totalorder %s129, %s132
      %p138 = scmp.eq.s32.totalorder %s16, 0
      %p139 = por %p137, %p138
      %p140 = scmp.ne.s32.totalorder %s129, %s132
      %p141 = scmp.eq.s32.totalorder %s21, 2
      %p142 = por %p140, %p141
      %p143 = scmp.ne.s32.totalorder %s132, %s133
      %p144 = scmp.eq.s32.totalorder %s21, 0
      %p145 = por %p143, %p144
      %p146 = scmp.ne.s32.totalorder %s132, %s133
      %p147 = scmp.eq.s32.totalorder %s22, 2
      %p148 = por %p146, %p147
      %p150 = scmp.ne.s32.totalorder %s133, %s149
      %p151 = scmp.eq.s32.totalorder %s22, 0
      %p152 = por %p150, %p151
      %p153 = scmp.le.s32.totalorder 1, %s16
      %p154 = scmp.lt.s32.totalorder %s16, 4
      %p155 = pnand %p153, %p154
      %p156 = pneg %p155
      // Predicated region
      $region9: #{tpu_custom_call.1} parent=5 // pred_check
        _
      $region10: #{tpu_custom_call.1} parent=5 // pred_check_branch
        %158 = sbr.rel (%p155) target = $region12
      $region11: #{tpu_custom_call.1} parent=5 // pred_region
        %s159 = ssub.s32 %s16, 1
        // Predicated region
        $region13: #{tpu_custom_call.1} parent=11 // pred_check
          %p160 = pneg %p63
        $region14: #{tpu_custom_call.1} parent=11 // pred_check_branch
          %162 = sbr.rel (%p160) target = $region16
        $region15: #{tpu_custom_call.1} parent=11 // pred_region
          %s163 = smul.u32 2, %s26
          %s165 = ssub.s32 256, 256
          %166 = vsyncadd [#allocation4], %s165
          %s167 = sadd.s32 %s28, %s163
          %s168 = smul.addr %s167, 128
          %s169 = scalar_lea.hbm %s0, %s168
          %s170 = sshll.u32 [#allocation3], 4
          %s171 = int_to_ptr.vmem [resolvable:$true] %s170
          %176 = dma.hbm_to_vmem [thread:$0]  %s169, 256, %s171, [#allocation4], 128, 128, 8
        $region16: #{tpu_custom_call.1} parent=11 // pred_fallthru
          _
      $region12: #{tpu_custom_call.1} parent=5 // pred_fallthru
        _
      %p177 = scmp.lt.s32.totalorder %s16, 3
      // Predicated region
      $region17: #{tpu_custom_call.1} parent=5 // pred_check
        %p178 = pneg %p177
      $region18: #{tpu_custom_call.1} parent=5 // pred_check_branch
        %180 = sbr.rel (%p178) target = $region20
      $region19: #{tpu_custom_call.1} parent=5 // pred_region
        // Predicated region
        $region21: #{tpu_custom_call.1} parent=19 // pred_check
          %p181 = pneg %p85
        $region22: #{tpu_custom_call.1} parent=19 // pred_check_branch
          %183 = sbr.rel (%p181) target = $region24
        $region23: #{tpu_custom_call.1} parent=19 // pred_region
          %s184 = sand.u32 %s75, 1
          %s185 = scalar_lea.sflag [#allocation7], %s184
          %s186 = sand.u32 %s75, 1
          %s187 = smul.addr %s186, 128
          %s188 = scalar_lea.vmem [#allocation6], %s187
          %s189 = smul.u32 16, %s25
          %s191 = ssub.s32 2048, 2048
          %192 = vsyncadd %s185, %s191
          %s193 = smul.addr %s189, 3
          %s194 = sadd.s32 %s24, %s193
          %s195 = smul.addr %s194, 128
          %s196 = scalar_lea.hbm %s1, %s195
          %s197 = sshll.u32 %s188, 4
          %s198 = int_to_ptr.vmem [resolvable:$true] %s197
          %203 = dma.hbm_to_vmem [thread:$0]  %s196, 2048, %s198, %s185, 384, 128, 8
        $region24: #{tpu_custom_call.1} parent=19 // pred_fallthru
          _
        // Predicated region
        $region25: #{tpu_custom_call.1} parent=19 // pred_check
          %p204 = pneg %p111
        $region26: #{tpu_custom_call.1} parent=19 // pred_check_branch
          %206 = sbr.rel (%p204) target = $region28
        $region27: #{tpu_custom_call.1} parent=19 // pred_region
          %p207 = scmp.lt.s32.totalorder %s24, 2
          %s208 = scalar_select %p207, %s24, 2
          %s209 = scalar_lea.vmem %s2, %s208
        $region28: #{tpu_custom_call.1} parent=19 // pred_fallthru
          _
      $region20: #{tpu_custom_call.1} parent=5 // pred_fallthru
        _
      %p210 = scmp.le.s32.totalorder 1, %s16
      %p211 = scmp.lt.s32.totalorder %s16, 4
      %p212 = pnand %p210, %p211
      %p213 = pneg %p212
      // Predicated region
      $region29: #{tpu_custom_call.1} parent=5 // pred_check
        _
      $region30: #{tpu_custom_call.1} parent=5 // pred_check_branch
        %215 = sbr.rel (%p212) target = $region32
      $region31: #{tpu_custom_call.1} parent=5 // pred_region
        %s216 = ssub.s32 %s16, 1
        // Predicated region
        $region33: #{tpu_custom_call.1} parent=31 // pred_check
          %p217 = pneg %p63
        $region34: #{tpu_custom_call.1} parent=31 // pred_check_branch
          %219 = sbr.rel (%p217) target = $region36
        $region35: #{tpu_custom_call.1} parent=31 // pred_region
          %220 = dma.done [#allocation4], 256
        $region36: #{tpu_custom_call.1} parent=31 // pred_fallthru
          _
        %s221 = sand.u32 %s78, 1
        %s222 = scalar_lea.sflag [#allocation7], %s221
        %s223 = sand.u32 %s78, 1
        %s224 = smul.addr %s223, 128
        %s225 = scalar_lea.vmem [#allocation6], %s224
        // Predicated region
        $region37: #{tpu_custom_call.1} parent=31 // pred_check
          %p226 = pneg %p91
        $region38: #{tpu_custom_call.1} parent=31 // pred_check_branch
          %228 = sbr.rel (%p226) target = $region40
        $region39: #{tpu_custom_call.1} parent=31 // pred_region
          %229 = dma.done %s222, 2048
        $region40: #{tpu_custom_call.1} parent=31 // pred_fallthru
          _
        %p230 = pneg %p63
        %p231 = pneg %p60
        %s232 = sand.u32 %s78, 1
        %s233 = scalar_lea.sflag [#allocation7], %s232
        %s234 = sand.u32 %s78, 1
        %s235 = smul.addr %s234, 128
        %s236 = scalar_lea.vmem [#allocation6], %s235
        %p237 = pneg %p91
        %p238 = pneg %p88
        %p239 = scmp.lt.s32.totalorder %s27, 2
        %s240 = scalar_select %p239, %s27, 2
        %s241 = scalar_lea.vmem %s2, %s240
        %p242 = pneg %p117
        %p243 = pneg %p114
        %p244 = pneg %p145
        %p245 = pneg %p142
        %s246 = sand.u32 %s132, 1
        %s247 = scalar_lea.sflag [#allocation5], %s246
        %s248 = sand.u32 %s132, 1
        %s249 = smul.addr %s248, 16
        %s250 = scalar_lea.vmem [#allocation8], %s249
        %s251 = smul.u32 2, %s26
        %s252 = smul.u32 16, %s28
        %p253 = scmp.lt.s32.totalorder %s27, 2
        %s254 = scalar_select %p253, %s27, 2
        %s255 = scalar_lea.vmem %s2, %s254
        %s256 = smul.u32 2, %s26
        %p257 = scmp.eq.s32.totalorder %s28, 0
        // Predicated region
        $region41: #{tpu_custom_call.1} parent=31 // pred_check
          %p258 = pneg %p257
        $region42: #{tpu_custom_call.1} parent=31 // pred_check_branch
          %260 = sbr.rel (%p258) target = $region44
        $region43: #{tpu_custom_call.1} parent=31 // pred_region
          %261 = vst [vmem:[#allocation2] sm:$0xff] 0.0
          %262 = vst [vmem:[#allocation2 + $0x8] sm:$0xff] 0.0
        $region44: #{tpu_custom_call.1} parent=31 // pred_fallthru
          _
        %v263 = vld [vmem:[#allocation3] sm:$0xff]
        %v264 = vld [vmem:[#allocation3 + $0x8] sm:$0xff]
        %v265 = vld [vmem:[%s225] sm:$0xff]
        %v266 = vld [vmem:[%s225 + $0x8] sm:$0xff]
        %v267 = vld [vmem:[%s225 + $0x10] sm:$0xff]
        %v268 = vld [vmem:[%s225 + $0x18] sm:$0xff]
        %v269 = vld [vmem:[%s225 + $0x20] sm:$0xff]
        %v270 = vld [vmem:[%s225 + $0x28] sm:$0xff]
        %v271 = vld [vmem:[%s225 + $0x30] sm:$0xff]
        %v272 = vld [vmem:[%s225 + $0x38] sm:$0xff]
        %v273 = vld [vmem:[%s225 + $0x40] sm:$0xff]
        %v274 = vld [vmem:[%s225 + $0x48] sm:$0xff]
        %v275 = vld [vmem:[%s225 + $0x50] sm:$0xff]
        %v276 = vld [vmem:[%s225 + $0x58] sm:$0xff]
        %v277 = vld [vmem:[%s225 + $0x60] sm:$0xff]
        %v278 = vld [vmem:[%s225 + $0x68] sm:$0xff]
        %v279 = vld [vmem:[%s225 + $0x70] sm:$0xff]
        %v280 = vld [vmem:[%s225 + $0x78] sm:$0xff]
        %v281 = vld [vmem:[#allocation2] sm:$0xff]
        %v282 = vld [vmem:[#allocation2 + $0x8] sm:$0xff]
        %283 = vmatprep.subr.mxu0 0.0
        %284 = vmatpush1.msra.mxu0 %v280
        %285 = vmatprep.subr.mxu0 0.0
        %286 = vmatpush1.msra.mxu0 %v279
        %287 = vmatprep.subr.mxu0 0.0
        %288 = vmatpush1.msra.mxu0 %v278
        %289 = vmatprep.subr.mxu0 0.0
        %290 = vmatpush1.msra.mxu0 %v277
        %291 = vmatprep.subr.mxu0 0.0
        %292 = vmatpush1.msra.mxu0 %v276
        %293 = vmatprep.subr.mxu0 0.0
        %294 = vmatpush1.msra.mxu0 %v275
        %295 = vmatprep.subr.mxu0 0.0
        %296 = vmatpush1.msra.mxu0 %v274
        %297 = vmatprep.subr.mxu0 0.0
        %298 = vmatpush1.msra.mxu0 %v273
        %299 = vmatprep.subr.mxu0 0.0
        %300 = vmatpush1.msra.mxu0 %v272
        %301 = vmatprep.subr.mxu0 0.0
        %302 = vmatpush1.msra.mxu0 %v271
        %303 = vmatprep.subr.mxu0 0.0
        %304 = vmatpush1.msra.mxu0 %v270
        %305 = vmatprep.subr.mxu0 0.0
        %306 = vmatpush1.msra.mxu0 %v269
        %307 = vmatprep.subr.mxu0 0.0
        %308 = vmatpush1.msra.mxu0 %v268
        %309 = vmatprep.subr.mxu0 0.0
        %310 = vmatpush1.msra.mxu0 %v267
        %311 = vmatprep.subr.mxu0 0.0
        %312 = vmatpush1.msra.mxu0 %v266
        %313 = vmatprep.subr.mxu0 0.0
        %314 = vmatpush1.msra.mxu0 %v265
        %315 = vmatprep.subr.mxu0 0.0
        %316 = vmatpush2.msra.mxu0 0.0
        %317 = vmatprep.subr.mxu0 0.0
        %318 = vmatpush2.msra.mxu0 0.0
        %319 = vmatprep.subr.mxu0 0.0
        %320 = vmatpush2.msra.mxu0 0.0
        %321 = vmatprep.subr.mxu0 0.0
        %322 = vmatpush2.msra.mxu0 0.0
        %323 = vmatprep.subr.mxu0 0.0
        %324 = vmatpush2.msra.mxu0 0.0
        %325 = vmatprep.subr.mxu0 0.0
        %326 = vmatpush2.msra.mxu0 0.0
        %327 = vmatprep.subr.mxu0 0.0
        %328 = vmatpush2.msra.mxu0 0.0
        %329 = vmatprep.subr.mxu0 0.0
        %330 = vmatpush2.msra.mxu0 0.0
        %331 = vmatprep.subr.mxu0 0.0
        %332 = vmatpush2.msra.mxu0 0.0
        %333 = vmatprep.subr.mxu0 0.0
        %334 = vmatpush2.msra.mxu0 0.0
        %335 = vmatprep.subr.mxu0 0.0
        %336 = vmatpush2.msra.mxu0 0.0
        %337 = vmatprep.subr.mxu0 0.0
        %338 = vmatpush2.msra.mxu0 0.0
        %339 = vmatprep.subr.mxu0 0.0
        %340 = vmatpush2.msra.mxu0 0.0
        %341 = vmatprep.subr.mxu0 0.0
        %342 = vmatpush2.msra.mxu0 0.0
        %343 = vmatprep.subr.mxu0 0.0
        %344 = vmatpush2.msra.mxu0 0.0
        %345 = vmatprep.subr.mxu0 0.0
        %346 = vmatpush2.msra.mxu0 0.0
        %347 = vmatprep.mubr.f32.mxu0 0.0
        %348 = vmatmul.mubr.f32.gmra.mxu0 %v263
        %v349 = vpop.f32.mrf.mxu0
        %v350 = vadd.f32 0.0, %v349
        %v351 = vpop.f32.mrf.mxu0
        %352 = vmatprep.mubr.f32.mxu0 0.0
        %353 = vmatmul.mubr.f32.gmra.mxu0 %v264
        %v354 = vpop.f32.mrf.mxu0
        %v355 = vadd.f32 0.0, %v354
        %v356 = vpop.f32.mrf.mxu0
        %357 = vdwg.mxu0
        %v358 = vadd.f32 %v281, %v350
        %v359 = vadd.f32 %v282, %v355
        %360 = vst [vmem:[#allocation2] sm:$0xff] %v358
        %361 = vst [vmem:[#allocation2 + $0x8] sm:$0xff] %v359
        // Predicated region
        $region45: #{tpu_custom_call.1} parent=31 // pred_check
          %p362 = pneg %p257
        $region46: #{tpu_custom_call.1} parent=31 // pred_check_branch
          %364 = sbr.rel (%p362) target = $region48
        $region47: #{tpu_custom_call.1} parent=31 // pred_region
          %v365 = vld [vmem:[#allocation2] sm:$0xff]
          %v366 = vld [vmem:[#allocation2 + $0x8] sm:$0xff]
          %v367 = vld [vmem:[%s255] sm:$0x1]
          %v369 = vlaneseq
          %v370 = vshrl.u32 %v369, 7
          %v371 = vsub.s32 0, %v370
          %v372 = vrot.slane %v367, %v371
          %v374 = vadd.f32 %v365, %v372
          %v375 = vadd.f32 %v366, %v372
          %376 = vst [vmem:[%s250] sm:$0xff] %v374
          %377 = vst [vmem:[%s250 + $0x8] sm:$0xff] %v375
        $region48: #{tpu_custom_call.1} parent=31 // pred_fallthru
          _
        %s378 = sand.u32 %s132, 1
        %s379 = scalar_lea.sflag [#allocation5], %s378
        %s380 = sand.u32 %s132, 1
        %s381 = smul.addr %s380, 16
        %s382 = scalar_lea.vmem [#allocation8], %s381
        // Predicated region
        $region49: #{tpu_custom_call.1} parent=31 // pred_check
          %p383 = pneg %p142
        $region50: #{tpu_custom_call.1} parent=31 // pred_check_branch
          %385 = sbr.rel (%p383) target = $region52
        $region51: #{tpu_custom_call.1} parent=31 // pred_region
          %s386 = smul.u32 2, %s26
          %s388 = ssub.s32 256, 256
          %389 = vsyncadd %s379, %s388
          %s390 = smul.addr %s386, 3
          %s391 = sadd.s32 %s27, %s390
          %s392 = smul.addr %s391, 128
          %s393 = scalar_lea.hbm %s3, %s392
          %s394 = sshll.u32 %s382, 4
          %s395 = int_to_ptr.vmem [resolvable:$true] %s394
          %400 = dma.vmem_to_hbm [thread:$0]  %s395, 256, %s393, %s379, 128, 384, 8
        $region52: #{tpu_custom_call.1} parent=31 // pred_fallthru
          _
      $region32: #{tpu_custom_call.1} parent=5 // pred_fallthru
        _
      %p401 = scmp.le.s32.totalorder 2, %s16
      // Predicated region
      $region53: #{tpu_custom_call.1} parent=5 // pred_check
        %p402 = pneg %p401
      $region54: #{tpu_custom_call.1} parent=5 // pred_check_branch
        %404 = sbr.rel (%p402) target = $region56
      $region55: #{tpu_custom_call.1} parent=5 // pred_region
        %s405 = ssub.s32 %s16, 2
        // Predicated region
        $region57: #{tpu_custom_call.1} parent=55 // pred_check
          %p406 = pneg %p148
        $region58: #{tpu_custom_call.1} parent=55 // pred_check_branch
          %408 = sbr.rel (%p406) target = $region60
        $region59: #{tpu_custom_call.1} parent=55 // pred_region
          %s409 = sand.u32 %s133, 1
          %s410 = scalar_lea.sflag [#allocation5], %s409
          %s411 = sand.u32 %s133, 1
          %s412 = smul.addr %s411, 16
          %s413 = scalar_lea.vmem [#allocation8], %s412
          %414 = dma.done %s410, 256
        $region60: #{tpu_custom_call.1} parent=55 // pred_fallthru
          _
      $region56: #{tpu_custom_call.1} parent=5 // pred_fallthru
        _
    $region6: #{tpu_custom_call.1} parent=1 // loop_footer
      %s20 = sadd.s32 1, %s16
    $region7: #{tpu_custom_call.1} parent=1 // loop_footer_branch
      %15 = sbr.rel target = $region3
    $region8: #{tpu_custom_call.1} parent=1 // loop_exit
      _
    %415 = vsyncpa [#allocation4], 1
    %s416 = scalar_lea.sflag [#allocation4], 1
    %417 = vsyncpa %s416, 1
    %418 = vsyncpa [#allocation7], 1
    %s419 = scalar_lea.sflag [#allocation7], 1
    %420 = vsyncpa %s419, 1
    %421 = vsyncpa [#allocation5], 1
    %s422 = scalar_lea.sflag [#allocation5], 1
    %423 = vsyncpa %s422, 1

</llo_original>
